<compile_context>
chip_gen: v5e
topology: v5e:2x2
jax: 0.10.0
libtpu: 0.0.40
codegen_flags: <defaults>
</compile_context>

<pallas_src>
import jax
import jax.numpy as jnp
from jax.experimental import pallas as pl
from jax.experimental.pallas import tpu as pltpu

LN_EPS = 1e-5      # torch.nn.LayerNorm default
LANE = 128
SUBLANE = 8
MAX_B_TILE = 1024  # batch rows per grid step (multiple of 8 sublanes)
MXU_DTYPE = jnp.bfloat16


def _round_up(n, m):
    return (n + m - 1) // m * m


def _cdiv(a, b):
    return -(-a // b)


def _detect_hw():
    """Host-side chip detection (perf-only decisions; safe fallback)."""
    try:
        dk = jax.devices()[0].device_kind.lower()
    except Exception:
        dk = ""
    multi_tc = "v7" in dk                       # 2 TensorCores per chip
    bf16_ew = ("v6" in dk) or ("v7" in dk)      # native bf16 VPU/EUP
    return multi_tc, bf16_ew


MULTI_TC, _BF16_EW = _detect_hw()
EW_DTYPE = jnp.bfloat16 if _BF16_EW else jnp.float32


def _make_fused_kernel(true_dims, out_sz, n_layers, ew_dtype):
    """Build the fused MLP kernel.

    true_dims[i] is the true (unpadded) output width of hidden layer i; LayerNorm
    statistics must be computed over this count, not the padded 128 lanes.
    """
    use_bf16_ew = (ew_dtype == jnp.bfloat16)

    def kernel(*args):
        x_ref = args[0]
        layer_refs = args[1:1 + 4 * n_layers]
        w_out_ref = args[1 + 4 * n_layers]
        b_out_ref = args[2 + 4 * n_layers]
        o_ref = args[-1]

        h = x_ref[...]  # (Bt, n_cont) f32 — Mosaic lane-pads in VMEM for free
        for li in range(n_layers):
            w = layer_refs[4 * li][...]        # (Pin, Pout) bf16, pre-transposed
            b = layer_refs[4 * li + 1][...]    # (1, Pout) f32, pad lanes = 0
            g = layer_refs[4 * li + 2][...]    # (1, Pout) ew_dtype, pad lanes = 0
            be = layer_refs[4 * li + 3][...]   # (1, Pout) ew_dtype, pad lanes = 0
            inv_d = 1.0 / float(true_dims[li])

            # MXU: bf16 operands, f32 accumulation.
            y = jnp.dot(h.astype(MXU_DTYPE), w,
                        preferred_element_type=jnp.float32) + b

            # One-pass LayerNorm stats over the TRUE width, always in f32.
            # (pad lanes of y are exactly 0, so full-width sums == true-width sums)
            s = jnp.sum(y, axis=-1, keepdims=True)
            sq = jnp.sum(y * y, axis=-1, keepdims=True)
            mean = s * inv_d
            var = jnp.maximum(sq * inv_d - mean * mean, 0.0)  # biased var (PyTorch LN)
            inv_std = jax.lax.rsqrt(var + LN_EPS)

            if use_bf16_ew:
                # v6e/v7x: bf16 VPU/EUP — do the post-stats elementwise chain in bf16.
                yb = y.astype(jnp.bfloat16)
                yn = (yb - mean.astype(jnp.bfloat16)) * inv_std.astype(jnp.bfloat16)
                yn = yn * g + be                   # pad lanes -> exactly 0
                h = yn * jax.nn.sigmoid(yn)        # SiLU in bf16; silu(0)=0
            else:
                # v5e and older: no bf16 VALU/EUP — keep the chain in f32.
                yn = (y - mean) * inv_std * g + be
                h = yn * jax.nn.sigmoid(yn)
            # TODO(synk): dropout (self.drops) is identity in eval mode; no RNG.

        if out_sz == 1:
            # 1-wide head: VPU multiply + XLU reduce (f32) instead of a 1-lane MXU pass.
            o = jnp.sum(h.astype(jnp.float32) * w_out_ref[...],
                        axis=-1, keepdims=True) + b_out_ref[...]
        else:
            o = jnp.dot(h.astype(MXU_DTYPE), w_out_ref[...],
                        preferred_element_type=jnp.float32) + b_out_ref[...]
        o_ref[...] = o.astype(o_ref.dtype)

    return kernel


def init_params(key, n_cont, szs, out_sz):
    """Deterministic parameter init mirroring RegModel.__init__ shapes.

    Linear weights: kaiming_normal_ (fan_in, gain=sqrt(2)) -> std = sqrt(2/fan_in)
    Linear biases:  torch default uniform(-1/sqrt(fan_in), 1/sqrt(fan_in))
    LayerNorm:      gamma = 1, beta = 0
    Weights kept PyTorch-style (out, in) here; packing transposes them.
    """
    dims = [n_cont] + list(szs)
    params = {"lins": [], "bns": []}
    for i in range(len(dims) - 1):
        din, dout = dims[i], dims[i + 1]
        key, kw, kb = jax.random.split(key, 3)
        std = (2.0 / din) ** 0.5
        w = jax.random.normal(kw, (dout, din), jnp.float32) * std
        bound = 1.0 / (din ** 0.5)
        b = jax.random.uniform(kb, (dout,), jnp.float32, -bound, bound)
        params["lins"].append((w, b))
        params["bns"].append((jnp.ones((dout,), jnp.float32),
                              jnp.zeros((dout,), jnp.float32)))
    din, dout = dims[-1], out_sz
    key, kw, kb = jax.random.split(key, 3)
    std = (2.0 / din) ** 0.5
    w = jax.random.normal(kw, (dout, din), jnp.float32) * std
    bound = 1.0 / (din ** 0.5)
    b = jax.random.uniform(kb, (dout,), jnp.float32, -bound, bound)
    params["outp"] = (w, b)
    return params


def pack_params(params, ew_dtype=EW_DTYPE):
    """One-time layout plumbing.

    Transpose (out,in)->(in,out), zero-pad output features to 128 lanes,
    cast matmul weights to bf16.  The FIRST hidden layer keeps its true input
    width (n_cont) so x never needs lane-padding in the wrapper.
    gamma/beta/bias pad lanes are ZERO so pad lanes stay exactly 0 end-to-end.
    """
    packed = {"layers": [], "true_dims": []}
    n_cont = params["lins"][0][0].shape[1]
    for li, ((w, b), (gamma, beta)) in enumerate(zip(params["lins"], params["bns"])):
        dout, din = w.shape
        pin = din if li == 0 else _round_up(din, LANE)
        pout = _round_up(dout, LANE)
        wp = jnp.zeros((pin, pout), jnp.float32).at[:din, :dout].set(w.T).astype(MXU_DTYPE)
        bp = jnp.zeros((1, pout), jnp.float32).at[0, :dout].set(b)                     # f32
        gp = jnp.zeros((1, pout), jnp.float32).at[0, :dout].set(gamma).astype(ew_dtype)
        bep = jnp.zeros((1, pout), jnp.float32).at[0, :dout].set(beta).astype(ew_dtype)
        packed["layers"].append((wp, bp, gp, bep))
        packed["true_dims"].append(dout)

    w, b = params["outp"]
    out_sz, din = w.shape
    pin = _round_up(din, LANE)
    if out_sz == 1:
        # VPU/XLU head -> keep f32.
        wp = jnp.zeros((1, pin), jnp.float32).at[0, :din].set(w[0])
        bp = b.reshape(1, 1).astype(jnp.float32)
    else:
        wp = jnp.zeros((pin, out_sz), jnp.float32).at[:din, :].set(w.T).astype(MXU_DTYPE)
        bp = b.reshape(1, out_sz).astype(jnp.float32)
    packed["outp"] = (wp, bp)
    packed["out_sz"] = out_sz
    packed["n_cont"] = n_cont
    packed["ew_dtype"] = ew_dtype
    return packed


def build_forward(packed):
    """Returns a single-jit forward: x (B, n_cont) -> RegModel output."""
    true_dims = tuple(int(d) for d in packed["true_dims"])
    out_sz = int(packed["out_sz"])
    n_cont = int(packed["n_cont"])
    n_layers = len(true_dims)
    kernel = _make_fused_kernel(true_dims, out_sz, n_layers, packed["ew_dtype"])

    flat_params = []
    for tup in packed["layers"]:
        flat_params.extend(tup)
    flat_params.extend(packed["outp"])
    flat_params = tuple(flat_params)

    out_width = 1 if out_sz == 1 else out_sz

    @jax.jit
    def forward(x):
        b = x.shape[0]

        # Balanced batch tiling: never round up by nearly a full tile, and on
        # v7x ensure >=2 grid steps so "parallel" shards across both TCs.
        n_tiles = max(1, _cdiv(b, MAX_B_TILE))
        if MULTI_TC and b >= 2 * SUBLANE:
            n_tiles = max(n_tiles, 2)
        b_tile = _round_up(_cdiv(b, n_tiles), SUBLANE)
        b_pad = _round_up(b, b_tile)
        grid = b_pad // b_tile

        # No lane-padding of x: only (rare) row-padding to a whole number of tiles.
        xf = x.astype(jnp.float32)
        if b_pad != b:
            xf = jnp.zeros((b_pad, n_cont), jnp.float32).at[:b].set(xf)

        # Parameters: full-array blocks, same block every batch tile -> VMEM resident.
        param_specs = [pl.BlockSpec(p.shape, lambda i: (0, 0)) for p in flat_params]

        out = pl.pallas_call(
            kernel,
            out_shape=jax.ShapeDtypeStruct((b_pad, out_width), jnp.float32),
            grid_spec=pltpu.PrefetchScalarGridSpec(
                num_scalar_prefetch=0,
                grid=(grid,),
                in_specs=[pl.BlockSpec((b_tile, n_cont), lambda i: (i, 0))] + param_specs,
                out_specs=pl.BlockSpec((b_tile, out_width), lambda i: (i, 0)),
            ),
            compiler_params=pltpu.CompilerParams(
                dimension_semantics=("parallel",),   # megacore batch sharding on v7x
            ),
        )(xf, *flat_params)

        return jnp.squeeze(out[:b])  # mirrors x.squeeze()

    return forward


def reference_forward(params, x):
    """Pure-JAX f32 reference (eval-mode RegModel.forward) for correctness check."""
    h = x.astype(jnp.float32)
    for (w, b), (g, be) in zip(params["lins"], params["bns"]):
        y = h @ w.T + b
        mean = jnp.mean(y, axis=-1, keepdims=True)
        var = jnp.mean((y - mean) ** 2, axis=-1, keepdims=True)
        yn = (y - mean) / jnp.sqrt(var + LN_EPS) * g + be
        h = yn * jax.nn.sigmoid(yn)
    w, b = params["outp"]
    return jnp.squeeze(h @ w.T + b)


if __name__ == "__main__":
    # Small shapes consistent with the module: continuous features -> MLP -> scalar out.
    batch = 8
    n_cont = 16
    szs = [32, 64]
    out_sz = 1

    key = jax.random.PRNGKey(0)
    key, kx = jax.random.split(key)
    x = jax.random.normal(kx, (batch, n_cont), jnp.float32)

    params = init_params(key, n_cont, szs, out_sz)
    packed = pack_params(params)
    forward = build_forward(packed)

    out = jax.block_until_ready(forward(x))

    assert out.shape == (batch,), out.shape
    assert jnp.all(jnp.isfinite(out))

    # bf16 MXU operands (and bf16 elementwise on v6e/v7x) vs. f32 reference.
    ref = reference_forward(params, x)
    assert jnp.allclose(out, ref, rtol=3e-2, atol=3e-2), (out, ref)

    print("KERNEL_OK")
</pallas_src>

<mosaic_0001>
module attributes {stable_mosaic.version = 11 : i64} {
  func.func @kernel(%arg0: i32, %arg1: memref<8x16xf32, #tpu.memory_space<vmem>>, %arg2: memref<16x128xbf16, #tpu.memory_space<vmem>>, %arg3: memref<1x128xf32, #tpu.memory_space<vmem>>, %arg4: memref<1x128xf32, #tpu.memory_space<vmem>>, %arg5: memref<1x128xf32, #tpu.memory_space<vmem>>, %arg6: memref<128x128xbf16, #tpu.memory_space<vmem>>, %arg7: memref<1x128xf32, #tpu.memory_space<vmem>>, %arg8: memref<1x128xf32, #tpu.memory_space<vmem>>, %arg9: memref<1x128xf32, #tpu.memory_space<vmem>>, %arg10: memref<1x128xf32, #tpu.memory_space<vmem>>, %arg11: memref<1x1xf32, #tpu.memory_space<vmem>>, %arg12: memref<8x1xf32, #tpu.memory_space<vmem>>) attributes {dimension_semantics = [#tpu.dimension_semantics<parallel>], iteration_bounds = array<i64: 1>, scalar_prefetch = 0 : i64, scratch_operands = 0 : i64, tpu.core_type = #tpu.core_type<tc>, window_params = [{transform_indices = @transform_0, window_bounds = array<i64: 8, 16>}, {pipeline_mode = #tpu.pipeline_mode<synchronous>, transform_indices = @transform_1, window_bounds = array<i64: 16, 128>}, {pipeline_mode = #tpu.pipeline_mode<synchronous>, transform_indices = @transform_2, window_bounds = array<i64: 1, 128>}, {pipeline_mode = #tpu.pipeline_mode<synchronous>, transform_indices = @transform_3, window_bounds = array<i64: 1, 128>}, {pipeline_mode = #tpu.pipeline_mode<synchronous>, transform_indices = @transform_4, window_bounds = array<i64: 1, 128>}, {pipeline_mode = #tpu.pipeline_mode<synchronous>, transform_indices = @transform_5, window_bounds = array<i64: 128, 128>}, {pipeline_mode = #tpu.pipeline_mode<synchronous>, transform_indices = @transform_6, window_bounds = array<i64: 1, 128>}, {pipeline_mode = #tpu.pipeline_mode<synchronous>, transform_indices = @transform_7, window_bounds = array<i64: 1, 128>}, {pipeline_mode = #tpu.pipeline_mode<synchronous>, transform_indices = @transform_8, window_bounds = array<i64: 1, 128>}, {pipeline_mode = #tpu.pipeline_mode<synchronous>, transform_indices = @transform_9, window_bounds = array<i64: 1, 128>}, {pipeline_mode = #tpu.pipeline_mode<synchronous>, transform_indices = @transform_10, window_bounds = array<i64: 1, 1>}, {transform_indices = @transform_11, window_bounds = array<i64: 8, 1>}]} {
    %c0 = arith.constant 0 : index
    %c0_0 = arith.constant 0 : index
    %0 = vector.load %arg1[%c0, %c0_0] : memref<8x16xf32, #tpu.memory_space<vmem>>, vector<8x16xf32>
    %c0_1 = arith.constant 0 : index
    %c0_2 = arith.constant 0 : index
    %1 = vector.load %arg2[%c0_1, %c0_2] : memref<16x128xbf16, #tpu.memory_space<vmem>>, vector<16x128xbf16>
    %c0_3 = arith.constant 0 : index
    %c0_4 = arith.constant 0 : index
    %2 = vector.load %arg3[%c0_3, %c0_4] : memref<1x128xf32, #tpu.memory_space<vmem>>, vector<1x128xf32>
    %c0_5 = arith.constant 0 : index
    %c0_6 = arith.constant 0 : index
    %3 = vector.load %arg4[%c0_5, %c0_6] : memref<1x128xf32, #tpu.memory_space<vmem>>, vector<1x128xf32>
    %c0_7 = arith.constant 0 : index
    %c0_8 = arith.constant 0 : index
    %4 = vector.load %arg5[%c0_7, %c0_8] : memref<1x128xf32, #tpu.memory_space<vmem>>, vector<1x128xf32>
    %5 = arith.truncf %0 : vector<8x16xf32> to vector<8x16xbf16>
    %cst = arith.constant dense<0.000000e+00> : vector<8x128xf32>
    %6 = tpu.matmul %5, %1, %cst {dimension_numbers = #tpu.dot_dimension_numbers<[1], [0], [0], [1], [0, 0, 1, 1], [], []>} : vector<8x16xbf16>, vector<16x128xbf16>, vector<8x128xf32> -> vector<8x128xf32>
    %7 = vector.broadcast %2 : vector<1x128xf32> to vector<8x128xf32>
    %8 = arith.addf %6, %7 : vector<8x128xf32>
    %cst_9 = arith.constant dense<0.000000e+00> : vector<8xf32>
    %9 = vector.multi_reduction <add>, %8, %cst_9 [1] : vector<8x128xf32> to vector<8xf32>
    %10 = vector.shape_cast %9 : vector<8xf32> to vector<8x1xf32>
    %11 = arith.mulf %8, %8 : vector<8x128xf32>
    %cst_10 = arith.constant dense<0.000000e+00> : vector<8xf32>
    %12 = vector.multi_reduction <add>, %11, %cst_10 [1] : vector<8x128xf32> to vector<8xf32>
    %13 = vector.shape_cast %12 : vector<8xf32> to vector<8x1xf32>
    %cst_11 = arith.constant 3.125000e-02 : f32
    %14 = vector.broadcast %cst_11 : f32 to vector<8x1xf32>
    %15 = arith.mulf %10, %14 : vector<8x1xf32>
    %cst_12 = arith.constant 3.125000e-02 : f32
    %16 = vector.broadcast %cst_12 : f32 to vector<8x1xf32>
    %17 = arith.mulf %13, %16 : vector<8x1xf32>
    %18 = arith.mulf %15, %15 : vector<8x1xf32>
    %19 = arith.subf %17, %18 : vector<8x1xf32>
    %cst_13 = arith.constant 0.000000e+00 : f32
    %20 = vector.broadcast %cst_13 : f32 to vector<8x1xf32>
    %21 = arith.maximumf %19, %20 : vector<8x1xf32>
    %cst_14 = arith.constant 9.99999974E-6 : f32
    %22 = vector.broadcast %cst_14 : f32 to vector<8x1xf32>
    %23 = arith.addf %21, %22 : vector<8x1xf32>
    %24 = math.rsqrt %23 : vector<8x1xf32>
    %25 = vector.broadcast %15 : vector<8x1xf32> to vector<8x128xf32>
    %26 = arith.subf %8, %25 : vector<8x128xf32>
    %27 = vector.broadcast %24 : vector<8x1xf32> to vector<8x128xf32>
    %28 = arith.mulf %26, %27 : vector<8x128xf32>
    %29 = vector.broadcast %3 : vector<1x128xf32> to vector<8x128xf32>
    %30 = arith.mulf %28, %29 : vector<8x128xf32>
    %31 = vector.broadcast %4 : vector<1x128xf32> to vector<8x128xf32>
    %32 = arith.addf %30, %31 : vector<8x128xf32>
    %33 = arith.negf %32 : vector<8x128xf32>
    %34 = math.exp %33 : vector<8x128xf32>
    %cst_15 = arith.constant 1.000000e+00 : f32
    %35 = vector.broadcast %cst_15 : f32 to vector<8x128xf32>
    %36 = arith.addf %35, %34 : vector<8x128xf32>
    %37 = arith.divf %35, %36 : vector<8x128xf32>
    %38 = arith.mulf %32, %37 : vector<8x128xf32>
    %c0_16 = arith.constant 0 : index
    %c0_17 = arith.constant 0 : index
    %39 = vector.load %arg6[%c0_16, %c0_17] : memref<128x128xbf16, #tpu.memory_space<vmem>>, vector<128x128xbf16>
    %c0_18 = arith.constant 0 : index
    %c0_19 = arith.constant 0 : index
    %40 = vector.load %arg7[%c0_18, %c0_19] : memref<1x128xf32, #tpu.memory_space<vmem>>, vector<1x128xf32>
    %c0_20 = arith.constant 0 : index
    %c0_21 = arith.constant 0 : index
    %41 = vector.load %arg8[%c0_20, %c0_21] : memref<1x128xf32, #tpu.memory_space<vmem>>, vector<1x128xf32>
    %c0_22 = arith.constant 0 : index
    %c0_23 = arith.constant 0 : index
    %42 = vector.load %arg9[%c0_22, %c0_23] : memref<1x128xf32, #tpu.memory_space<vmem>>, vector<1x128xf32>
    %43 = arith.truncf %38 : vector<8x128xf32> to vector<8x128xbf16>
    %cst_24 = arith.constant dense<0.000000e+00> : vector<8x128xf32>
    %44 = tpu.matmul %43, %39, %cst_24 {dimension_numbers = #tpu.dot_dimension_numbers<[1], [0], [0], [1], [0, 0, 1, 1], [], []>} : vector<8x128xbf16>, vector<128x128xbf16>, vector<8x128xf32> -> vector<8x128xf32>
    %45 = vector.broadcast %40 : vector<1x128xf32> to vector<8x128xf32>
    %46 = arith.addf %44, %45 : vector<8x128xf32>
    %cst_25 = arith.constant dense<0.000000e+00> : vector<8xf32>
    %47 = vector.multi_reduction <add>, %46, %cst_25 [1] : vector<8x128xf32> to vector<8xf32>
    %48 = vector.shape_cast %47 : vector<8xf32> to vector<8x1xf32>
    %49 = arith.mulf %46, %46 : vector<8x128xf32>
    %cst_26 = arith.constant dense<0.000000e+00> : vector<8xf32>
    %50 = vector.multi_reduction <add>, %49, %cst_26 [1] : vector<8x128xf32> to vector<8xf32>
    %51 = vector.shape_cast %50 : vector<8xf32> to vector<8x1xf32>
    %cst_27 = arith.constant 1.562500e-02 : f32
    %52 = vector.broadcast %cst_27 : f32 to vector<8x1xf32>
    %53 = arith.mulf %48, %52 : vector<8x1xf32>
    %cst_28 = arith.constant 1.562500e-02 : f32
    %54 = vector.broadcast %cst_28 : f32 to vector<8x1xf32>
    %55 = arith.mulf %51, %54 : vector<8x1xf32>
    %56 = arith.mulf %53, %53 : vector<8x1xf32>
    %57 = arith.subf %55, %56 : vector<8x1xf32>
    %cst_29 = arith.constant 0.000000e+00 : f32
    %58 = vector.broadcast %cst_29 : f32 to vector<8x1xf32>
    %59 = arith.maximumf %57, %58 : vector<8x1xf32>
    %cst_30 = arith.constant 9.99999974E-6 : f32
    %60 = vector.broadcast %cst_30 : f32 to vector<8x1xf32>
    %61 = arith.addf %59, %60 : vector<8x1xf32>
    %62 = math.rsqrt %61 : vector<8x1xf32>
    %63 = vector.broadcast %53 : vector<8x1xf32> to vector<8x128xf32>
    %64 = arith.subf %46, %63 : vector<8x128xf32>
    %65 = vector.broadcast %62 : vector<8x1xf32> to vector<8x128xf32>
    %66 = arith.mulf %64, %65 : vector<8x128xf32>
    %67 = vector.broadcast %41 : vector<1x128xf32> to vector<8x128xf32>
    %68 = arith.mulf %66, %67 : vector<8x128xf32>
    %69 = vector.broadcast %42 : vector<1x128xf32> to vector<8x128xf32>
    %70 = arith.addf %68, %69 : vector<8x128xf32>
    %71 = arith.negf %70 : vector<8x128xf32>
    %72 = math.exp %71 : vector<8x128xf32>
    %cst_31 = arith.constant 1.000000e+00 : f32
    %73 = vector.broadcast %cst_31 : f32 to vector<8x128xf32>
    %74 = arith.addf %73, %72 : vector<8x128xf32>
    %75 = arith.divf %73, %74 : vector<8x128xf32>
    %76 = arith.mulf %70, %75 : vector<8x128xf32>
    %c0_32 = arith.constant 0 : index
    %c0_33 = arith.constant 0 : index
    %77 = vector.load %arg10[%c0_32, %c0_33] : memref<1x128xf32, #tpu.memory_space<vmem>>, vector<1x128xf32>
    %78 = vector.broadcast %77 : vector<1x128xf32> to vector<8x128xf32>
    %79 = arith.mulf %76, %78 : vector<8x128xf32>
    %cst_34 = arith.constant dense<0.000000e+00> : vector<8xf32>
    %80 = vector.multi_reduction <add>, %79, %cst_34 [1] : vector<8x128xf32> to vector<8xf32>
    %81 = vector.shape_cast %80 : vector<8xf32> to vector<8x1xf32>
    %c0_35 = arith.constant 0 : index
    %c0_36 = arith.constant 0 : index
    %82 = vector.load %arg11[%c0_35, %c0_36] : memref<1x1xf32, #tpu.memory_space<vmem>>, vector<1x1xf32>
    %83 = vector.broadcast %82 : vector<1x1xf32> to vector<8x1xf32>
    %84 = arith.addf %81, %83 : vector<8x1xf32>
    %c0_37 = arith.constant 0 : index
    %c0_38 = arith.constant 0 : index
    %85 = vector.load %arg12[%c0_37, %c0_38] : memref<8x1xf32, #tpu.memory_space<vmem>>, vector<8x1xf32>
    tpu.vector_store %arg12[%c0_37, %c0_38], %84 {strides = array<i32>} : memref<8x1xf32, #tpu.memory_space<vmem>>, vector<8x1xf32>,
    return
  }
  func.func @transform_0(%arg0: i32) -> (i32, i32) {
    %c0_i32 = arith.constant 0 : i32
    %c0_i32_0 = arith.constant 0 : i32
    return %arg0, %c0_i32 : i32, i32
  }
  func.func @transform_1(%arg0: i32) -> (i32, i32) {
    %c0_i32 = arith.constant 0 : i32
    %c0_i32_0 = arith.constant 0 : i32
    %c0_i32_1 = arith.constant 0 : i32
    return %c0_i32, %c0_i32_0 : i32, i32
  }
  func.func @transform_2(%arg0: i32) -> (i32, i32) {
    %c0_i32 = arith.constant 0 : i32
    %c0_i32_0 = arith.constant 0 : i32
    %c0_i32_1 = arith.constant 0 : i32
    return %c0_i32, %c0_i32_0 : i32, i32
  }
  func.func @transform_3(%arg0: i32) -> (i32, i32) {
    %c0_i32 = arith.constant 0 : i32
    %c0_i32_0 = arith.constant 0 : i32
    %c0_i32_1 = arith.constant 0 : i32
    return %c0_i32, %c0_i32_0 : i32, i32
  }
  func.func @transform_4(%arg0: i32) -> (i32, i32) {
    %c0_i32 = arith.constant 0 : i32
    %c0_i32_0 = arith.constant 0 : i32
    %c0_i32_1 = arith.constant 0 : i32
    return %c0_i32, %c0_i32_0 : i32, i32
  }
  func.func @transform_5(%arg0: i32) -> (i32, i32) {
    %c0_i32 = arith.constant 0 : i32
    %c0_i32_0 = arith.constant 0 : i32
    %c0_i32_1 = arith.constant 0 : i32
    return %c0_i32, %c0_i32_0 : i32, i32
  }
  func.func @transform_6(%arg0: i32) -> (i32, i32) {
    %c0_i32 = arith.constant 0 : i32
    %c0_i32_0 = arith.constant 0 : i32
    %c0_i32_1 = arith.constant 0 : i32
    return %c0_i32, %c0_i32_0 : i32, i32
  }
  func.func @transform_7(%arg0: i32) -> (i32, i32) {
    %c0_i32 = arith.constant 0 : i32
    %c0_i32_0 = arith.constant 0 : i32
    %c0_i32_1 = arith.constant 0 : i32
    return %c0_i32, %c0_i32_0 : i32, i32
  }
  func.func @transform_8(%arg0: i32) -> (i32, i32) {
    %c0_i32 = arith.constant 0 : i32
    %c0_i32_0 = arith.constant 0 : i32
    %c0_i32_1 = arith.constant 0 : i32
    return %c0_i32, %c0_i32_0 : i32, i32
  }
  func.func @transform_9(%arg0: i32) -> (i32, i32) {
    %c0_i32 = arith.constant 0 : i32
    %c0_i32_0 = arith.constant 0 : i32
    %c0_i32_1 = arith.constant 0 : i32
    return %c0_i32, %c0_i32_0 : i32, i32
  }
  func.func @transform_10(%arg0: i32) -> (i32, i32) {
    %c0_i32 = arith.constant 0 : i32
    %c0_i32_0 = arith.constant 0 : i32
    %c0_i32_1 = arith.constant 0 : i32
    return %c0_i32, %c0_i32_0 : i32, i32
  }
  func.func @transform_11(%arg0: i32) -> (i32, i32) {
    %c0_i32 = arith.constant 0 : i32
    %c0_i32_0 = arith.constant 0 : i32
    return %arg0, %c0_i32 : i32, i32
  }
}

</mosaic_0001>

<llo_original>
// kernel: forward.1
$region0: #{forward.1}
  #allocation0 [shape = 'u32[]', space=smem, size = 0x4, offset = 0x4, fixed_abs, tag = 'smem constant byte address 0x4 - core index']
  #allocation1 [shape = 'u32[72,128]{1,0:T(1,128)}', space=vmem, size = 0x9000, scoped, tag = 'internal scratch']
  #allocation2 [shape = 'f32[1,1]{1,0:T(1,128)S(1)}', space=vmem, size = 0x200, scoped, tag = 'scoped memory for forward.1']
  %s0 = inlined_call_operand.hbm [shape: f32[8,16], index: 0, kind: input, shape index: {}]
  %s1 = inlined_call_operand.hbm [shape: bf16[16,128], index: 1, kind: input, shape index: {}]
  %s2 = inlined_call_operand.vmem [shape: f32[1,128], index: 2, kind: input, shape index: {}]
  %s3 = inlined_call_operand.vmem [shape: f32[1,128], index: 3, kind: input, shape index: {}]
  %s4 = inlined_call_operand.vmem [shape: f32[1,128], index: 4, kind: input, shape index: {}, may-alias: {4,8}]
  %s5 = inlined_call_operand.hbm [shape: bf16[128,128], index: 5, kind: input, shape index: {}]
  %s6 = inlined_call_operand.vmem [shape: f32[1,128], index: 6, kind: input, shape index: {}]
  %s7 = inlined_call_operand.vmem [shape: f32[1,128], index: 7, kind: input, shape index: {}]
  %s8 = inlined_call_operand.vmem [shape: f32[1,128], index: 8, kind: input, shape index: {}, may-alias: {4,8}]
  %s9 = inlined_call_operand.vmem [shape: f32[1,128], index: 9, kind: input, shape index: {}]
  %s10 = inlined_call_operand.<no memory space> [shape: f32[1,1], index: 10, kind: input, shape index: {}]
  %s11 = inlined_call_operand.vmem [shape: f32[8,1], index: 11, kind: output, shape index: {}]
  %s12 = sld [smem:[#allocation0]]
  $region66: #{forward.1} parent=0
    _
  %s14 = ssub.s32 1, %s12
  %s15 = scalar_select 0, %s14, %s12
  %v16 = vstv %s10
  %17 = vst [vmem:[#allocation2] sm:$0x1] %v16
  $region1: #{forward.1} parent=0
    #allocation3 [shape = 'u8[4096]{0}', space=vmem, size = 0x1000, scoped, tag = 'input window, operand 0, single buffered']
    #allocation4 [shape = 's32[1]{0}', space=sflag, size = 0x4, scoped, tag = 'scoped memory for forward.1']
    #allocation5 [shape = 'u8[4096]{0}', space=vmem, size = 0x1000, scoped, tag = 'input window, operand 1, single buffered']
    #allocation6 [shape = 's32[1]{0}', space=sflag, size = 0x4, scoped, tag = 'scoped memory for forward.1']
    #allocation7 [shape = 'u8[32768]{0}', space=vmem, size = 0x8000, scoped, tag = 'input window, operand 5, single buffered']
    %18 = vsyncpa [#allocation4], 0
    %19 = vsyncpa [#allocation6], 0
    // Predicated region
    $region2: #{forward.1} parent=1 // pred_check
      _
    $region3: #{forward.1} parent=1 // pred_check_branch
      %21 = sbr.rel (0) target = $region5
    $region4: #{forward.1} parent=1 // pred_region
      %23 = vsyncadd [#allocation4], 0
      %s25 = sshll.u32 %s0, 4
      %s26 = int_to_ptr.hbm [resolvable:$true] %s25
      %s27 = sshll.u32 [#allocation3], 4
      %s28 = int_to_ptr.vmem [resolvable:$true] %s27
      %30 = dma.hbm_to_vmem [thread:$0]  %s26, 128, %s28, [#allocation4]
    $region5: #{forward.1} parent=1 // pred_fallthru
      _
    // Predicated region
    $region6: #{forward.1} parent=1 // pred_check
      _
    $region7: #{forward.1} parent=1 // pred_check_branch
      %32 = sbr.rel (0) target = $region9
    $region8: #{forward.1} parent=1 // pred_region
      %34 = vsyncadd [#allocation6], 0
      %s35 = sshll.u32 %s1, 4
      %s36 = int_to_ptr.hbm [resolvable:$true] %s35
      %s37 = sshll.u32 [#allocation5], 4
      %s38 = int_to_ptr.vmem [resolvable:$true] %s37
      %43 = dma.hbm_to_vmem [thread:$0]  %s36, 128, %s38, [#allocation6], 64, 64, 4
    $region9: #{forward.1} parent=1 // pred_fallthru
      _
    // Predicated region
    $region10: #{forward.1} parent=1 // pred_check
      _
    $region11: #{forward.1} parent=1 // pred_check_branch
      %45 = sbr.rel (0) target = $region13
    $region12: #{forward.1} parent=1 // pred_region
      _
    $region13: #{forward.1} parent=1 // pred_fallthru
      _
    // Predicated region
    $region14: #{forward.1} parent=1 // pred_check
      _
    $region15: #{forward.1} parent=1 // pred_check_branch
      %47 = sbr.rel (0) target = $region17
    $region16: #{forward.1} parent=1 // pred_region
      _
    $region17: #{forward.1} parent=1 // pred_fallthru
      _
    // Predicated region
    $region18: #{forward.1} parent=1 // pred_check
      _
    $region19: #{forward.1} parent=1 // pred_check_branch
      %49 = sbr.rel (0) target = $region21
    $region20: #{forward.1} parent=1 // pred_region
      _
    $region21: #{forward.1} parent=1 // pred_fallthru
      _
    // Predicated region
    $region22: #{forward.1} parent=1 // pred_check
      _
    $region23: #{forward.1} parent=1 // pred_check_branch
      %51 = sbr.rel (0) target = $region25
    $region24: #{forward.1} parent=1 // pred_region
      %53 = vsyncadd [#allocation6], 0
      %s54 = sshll.u32 %s5, 4
      %s55 = int_to_ptr.hbm [resolvable:$true] %s54
      %s56 = sshll.u32 [#allocation7], 4
      %s57 = int_to_ptr.vmem [resolvable:$true] %s56
      %62 = dma.hbm_to_vmem [thread:$0]  %s55, 1024, %s57, [#allocation6], 64, 64, 4
    $region25: #{forward.1} parent=1 // pred_fallthru
      _
    // Predicated region
    $region26: #{forward.1} parent=1 // pred_check
      _
    $region27: #{forward.1} parent=1 // pred_check_branch
      %64 = sbr.rel (0) target = $region29
    $region28: #{forward.1} parent=1 // pred_region
      _
    $region29: #{forward.1} parent=1 // pred_fallthru
      _
    // Predicated region
    $region30: #{forward.1} parent=1 // pred_check
      _
    $region31: #{forward.1} parent=1 // pred_check_branch
      %66 = sbr.rel (0) target = $region33
    $region32: #{forward.1} parent=1 // pred_region
      _
    $region33: #{forward.1} parent=1 // pred_fallthru
      _
    // Predicated region
    $region34: #{forward.1} parent=1 // pred_check
      _
    $region35: #{forward.1} parent=1 // pred_check_branch
      %68 = sbr.rel (0) target = $region37
    $region36: #{forward.1} parent=1 // pred_region
      _
    $region37: #{forward.1} parent=1 // pred_fallthru
      _
    // Predicated region
    $region38: #{forward.1} parent=1 // pred_check
      _
    $region39: #{forward.1} parent=1 // pred_check_branch
      %70 = sbr.rel (0) target = $region41
    $region40: #{forward.1} parent=1 // pred_region
      _
    $region41: #{forward.1} parent=1 // pred_fallthru
      _
    // Predicated region
    $region42: #{forward.1} parent=1 // pred_check
      _
    $region43: #{forward.1} parent=1 // pred_check_branch
      %72 = sbr.rel (0) target = $region45
    $region44: #{forward.1} parent=1 // pred_region
      _
    $region45: #{forward.1} parent=1 // pred_fallthru
      _
    // Predicated region
    $region46: #{forward.1} parent=1 // pred_check
      _
    $region47: #{forward.1} parent=1 // pred_check_branch
      %74 = sbr.rel (0) target = $region49
    $region48: #{forward.1} parent=1 // pred_region
      %76 = dma.done [#allocation4], 128
    $region49: #{forward.1} parent=1 // pred_fallthru
      _
    // Predicated region
    $region50: #{forward.1} parent=1 // pred_check
      _
    $region51: #{forward.1} parent=1 // pred_check_branch
      %78 = sbr.rel (0) target = $region53
    $region52: #{forward.1} parent=1 // pred_region
      %80 = dma.done [#allocation6], 128
    $region53: #{forward.1} parent=1 // pred_fallthru
      _
    // Predicated region
    $region54: #{forward.1} parent=1 // pred_check
      _
    $region55: #{forward.1} parent=1 // pred_check_branch
      %82 = sbr.rel (0) target = $region57
    $region56: #{forward.1} parent=1 // pred_region
      %84 = dma.done [#allocation6], 1024
    $region57: #{forward.1} parent=1 // pred_fallthru
      _
    %v86 = vld [vmem:[#allocation3] sm:$0xff]
    %v87 = vld [vmem:[#allocation5] sm:$0xf]
    %v88 = vld [vmem:[#allocation5 + $0x4] sm:$0xf]
    %v89 = vld [vmem:[%s2] sm:$0x1]
    %v90 = vld [vmem:[%s3] sm:$0x1]
    %v91 = vld [vmem:[%s4] sm:$0x1]
    %v92 = vpack.c.bf16 %v86, %v86
    %v94 = vperm.slane %v89, 0
    %v98 = vunpack.c.l.b16 %v87
    %v99 = vunpack.c.l.b16 %v88
    %v100 = vpack.c.b16 %v99, %v98
    %vm102 = vcmask 130048
    %v104 = vsel %vm102, %v92, 0
    %106 = vmatpush.bf16.msra.mxu0 0
    %107 = vmatpush.bf16.msra.mxu0 0
    %108 = vmatpush.bf16.msra.mxu0 0
    %109 = vmatpush.bf16.msra.mxu0 0
    %110 = vmatpush.bf16.msra.mxu0 0
    %111 = vmatpush.bf16.msra.mxu0 0
    %112 = vmatpush.bf16.msra.mxu0 0
    %113 = vmatpush.bf16.msra.mxu0 %v100
    %114 = vmatmul.bf16.gmra.mxu0 %v104
    %v115 = vpop.f32.mrf.mxu0
    %v116 = vadd.f32 %v94, %v115
    %v117 = vpop.f32.mrf.mxu0
    %118 = vdwg.mxu0
    %119 = vadd.xlane.f32.xlu0 %v116
    %v120 = vpop.xlane.xlu0 %119
    %v121 = vmul.f32 %v116, %v116
    %122 = vadd.xlane.f32.xlu0 %v121
    %v123 = vpop.xlane.xlu0 %122
    %v124 = vmul.f32 %v120, 0.03125
    %v125 = vmul.f32 %v123, 0.03125
    %v126 = vmul.f32 %v124, %v124
    %v127 = vsub.f32 %v125, %v126
    %v128 = vmax.f32 %v127, 0.0
    %v129 = vadd.f32 %v128, 1e-05
    %v130 = vrsqrt.pop %v129
    %v131 = vmul.f32 %v130, %v129
    %v132 = vmul.f32 %v131, %v130
    %v133 = vmul.f32 0.5, %v132
    %v134 = vsub.f32 1.5, %v133
    %v135 = vmul.f32 %v130, %v134
    %vm136 = vweird.f32 %v129
    %vm137 = vweird.f32 %v130
    %vm138 = vmor %vm136, %vm137
    %v139 = vsel %vm138, %v130, %v135
    %v140 = vsub.f32 %v116, %v124
    %v141 = vmul.f32 %v140, %v139
    %v143 = vperm.slane %v90, 0
    %v145 = vmul.f32 %v141, %v143
    %v147 = vperm.slane %v91, 0
    %v149 = vadd.f32 %v145, %v147
    %v150 = vxor.u32 %v149, 2147483648
    %v151 = vmul.f32 %v150, 1.442695
    %v152 = vpow.pop %v151
    %v153 = vadd.f32 %v152, 1.0
    %v154 = vrcp.pop %v153
    %v155 = vmul.f32 %v153, %v154
    %v156 = vsub.f32 1.0, %v155
    %v157 = vmul.f32 %v154, %v156
    %v158 = vadd.f32 %v154, %v157
    %vm159 = vweird.f32 %v153
    %vm160 = vweird.f32 %v154
    %vm161 = vmor %vm159, %vm160
    %v162 = vsel %vm161, %v154, %v158
    %v163 = vand.u32 2147483647, %v153
    %vm164 = vcmp.eq.f32.partialorder %v163, 8.507059e+37
    %v165 = vand.u32 %v153, 2147483648
    %v166 = vor.u32 1.1754944e-38, %v165
    %v167 = vsel %vm164, %v166, %v162
    %v168 = vmul.f32 1.0, %v167
    %v169 = vmul.f32 %v149, %v168
    %v170 = vld [vmem:[#allocation7] sm:$0xf]
    %v171 = vld [vmem:[#allocation7 + $0x4] sm:$0xf]
    %v172 = vld [vmem:[#allocation7 + $0x8] sm:$0xf]
    %v173 = vld [vmem:[#allocation7 + $0xc] sm:$0xf]
    %v174 = vld [vmem:[#allocation7 + $0x10] sm:$0xf]
    %v175 = vld [vmem:[#allocation7 + $0x14] sm:$0xf]
    %v176 = vld [vmem:[#allocation7 + $0x18] sm:$0xf]
    %v177 = vld [vmem:[#allocation7 + $0x1c] sm:$0xf]
    %v178 = vld [vmem:[#allocation7 + $0x20] sm:$0xf]
    %v179 = vld [vmem:[#allocation7 + $0x24] sm:$0xf]
    %v180 = vld [vmem:[#allocation7 + $0x28] sm:$0xf]
    %v181 = vld [vmem:[#allocation7 + $0x2c] sm:$0xf]
    %v182 = vld [vmem:[#allocation7 + $0x30] sm:$0xf]
    %v183 = vld [vmem:[#allocation7 + $0x34] sm:$0xf]
    %v184 = vld [vmem:[#allocation7 + $0x38] sm:$0xf]
    %v185 = vld [vmem:[#allocation7 + $0x3c] sm:$0xf]
    %v186 = vld [vmem:[%s6] sm:$0x1]
    %v187 = vld [vmem:[%s7] sm:$0x1]
    %v188 = vld [vmem:[%s8] sm:$0x1]
    %v189 = vpack.c.bf16 %v169, %v169
    %v191 = vperm.slane %v186, 0
    %v209 = vunpack.c.l.b16 %v170
    %v210 = vunpack.c.l.b16 %v171
    %v211 = vunpack.c.l.b16 %v172
    %v212 = vunpack.c.l.b16 %v173
    %v213 = vunpack.c.l.b16 %v174
    %v214 = vunpack.c.l.b16 %v175
    %v215 = vunpack.c.l.b16 %v176
    %v216 = vunpack.c.l.b16 %v177
    %v217 = vunpack.c.l.b16 %v178
    %v218 = vunpack.c.l.b16 %v179
    %v219 = vunpack.c.l.b16 %v180
    %v220 = vunpack.c.l.b16 %v181
    %v221 = vunpack.c.l.b16 %v182
    %v222 = vunpack.c.l.b16 %v183
    %v223 = vunpack.c.l.b16 %v184
    %v224 = vunpack.c.l.b16 %v185
    %v225 = vpack.c.b16 %v210, %v209
    %v226 = vpack.c.b16 %v212, %v211
    %v227 = vpack.c.b16 %v214, %v213
    %v228 = vpack.c.b16 %v216, %v215
    %v229 = vpack.c.b16 %v218, %v217
    %v230 = vpack.c.b16 %v220, %v219
    %v231 = vpack.c.b16 %v222, %v221
    %v232 = vpack.c.b16 %v224, %v223
    %241 = vmatpush.bf16.msra.mxu0 %v232
    %242 = vmatpush.bf16.msra.mxu0 %v231
    %243 = vmatpush.bf16.msra.mxu0 %v230
    %244 = vmatpush.bf16.msra.mxu0 %v229
    %245 = vmatpush.bf16.msra.mxu0 %v228
    %246 = vmatpush.bf16.msra.mxu0 %v227
    %247 = vmatpush.bf16.msra.mxu0 %v226
    %248 = vmatpush.bf16.msra.mxu0 %v225
    %249 = vmatmul.bf16.gmra.mxu0 %v189
    %v250 = vpop.f32.mrf.mxu0
    %v251 = vadd.f32 %v191, %v250
    %v252 = vpop.f32.mrf.mxu0
    %253 = vdwg.mxu0
    %254 = vadd.xlane.f32.xlu0 %v251
    %v255 = vpop.xlane.xlu0 %254
    %v256 = vmul.f32 %v251, %v251
    %257 = vadd.xlane.f32.xlu0 %v256
    %v258 = vpop.xlane.xlu0 %257
    %v259 = vmul.f32 %v255, 0.015625
    %v260 = vmul.f32 %v258, 0.015625
    %v261 = vmul.f32 %v259, %v259
    %v262 = vsub.f32 %v260, %v261
    %v263 = vmax.f32 %v262, 0.0
    %v264 = vadd.f32 %v263, 1e-05
    %v265 = vrsqrt.pop %v264
    %v266 = vmul.f32 %v265, %v264
    %v267 = vmul.f32 %v266, %v265
    %v268 = vmul.f32 0.5, %v267
    %v269 = vsub.f32 1.5, %v268
    %v270 = vmul.f32 %v265, %v269
    %vm271 = vweird.f32 %v264
    %vm272 = vweird.f32 %v265
    %vm273 = vmor %vm271, %vm272
    %v274 = vsel %vm273, %v265, %v270
    %v275 = vsub.f32 %v251, %v259
    %v276 = vmul.f32 %v275, %v274
    %v278 = vperm.slane %v187, 0
    %v280 = vmul.f32 %v276, %v278
    %v282 = vperm.slane %v188, 0
    %v284 = vadd.f32 %v280, %v282
    %v285 = vxor.u32 %v284, 2147483648
    %v286 = vmul.f32 %v285, 1.442695
    %v287 = vpow.pop %v286
    %v288 = vadd.f32 %v287, 1.0
    %v289 = vrcp.pop %v288
    %v290 = vmul.f32 %v288, %v289
    %v291 = vsub.f32 1.0, %v290
    %v292 = vmul.f32 %v289, %v291
    %v293 = vadd.f32 %v289, %v292
    %vm294 = vweird.f32 %v288
    %vm295 = vweird.f32 %v289
    %vm296 = vmor %vm294, %vm295
    %v297 = vsel %vm296, %v289, %v293
    %v298 = vand.u32 2147483647, %v288
    %vm299 = vcmp.eq.f32.partialorder %v298, 8.507059e+37
    %v300 = vand.u32 %v288, 2147483648
    %v301 = vor.u32 1.1754944e-38, %v300
    %v302 = vsel %vm299, %v301, %v297
    %v303 = vmul.f32 1.0, %v302
    %v304 = vmul.f32 %v284, %v303
    %v305 = vld [vmem:[%s9] sm:$0x1]
    %v307 = vperm.slane %v305, 0
    %v309 = vmul.f32 %v304, %v307
    %310 = vadd.xlane.f32.xlu0 %v309
    %v311 = vpop.xlane.xlu0 %310
    %v312 = vld [vmem:[#allocation2] sm:$0x1]
    %v314 = vperm.slane %v312, 0
    %v316 = vadd.f32 %v311, %v314
    %vm317 = vcmask 7168
    %318 = vst.msk [vmem:[%s11] sm:$0xff] %vm317, %v316
    // Predicated region
    $region58: #{forward.1} parent=1 // pred_check
      _
    $region59: #{forward.1} parent=1 // pred_check_branch
      %320 = sbr.rel (0) target = $region61
    $region60: #{forward.1} parent=1 // pred_region
      _
    $region61: #{forward.1} parent=1 // pred_fallthru
      _
    // Predicated region
    $region62: #{forward.1} parent=1 // pred_check
      _
    $region63: #{forward.1} parent=1 // pred_check_branch
      %322 = sbr.rel (0) target = $region65
    $region64: #{forward.1} parent=1 // pred_region
      _
    $region65: #{forward.1} parent=1 // pred_fallthru
      _
    %323 = vsyncpa [#allocation4], 1
    %324 = vsyncpa [#allocation6], 1

</llo_original>
